<compile_context>
chip_gen: v5e
topology: v5e:2x2
jax: 0.10.0
libtpu: 0.0.40
codegen_flags: <defaults>
</compile_context>

<pallas_src>
import functools

import jax
import jax.numpy as jnp
from jax import lax
from jax.experimental import pallas as pl
from jax.experimental.pallas import tpu as pltpu


_MIB = 1024 * 1024


def _round_up(x, m):
    return ((x + m - 1) // m) * m


def _vmem_capacity_bytes():
    try:
        return int(pltpu.get_tpu_info().vmem_capacity_bytes)
    except Exception:
        return 64 * _MIB            # conservative (v7x-sized) fallback


def _tile_budget_bytes(cap):
    # Tile-sizing budget: ~24 MiB on 64 MiB parts (v7x), ~83 MiB on 128 MiB parts.
    return max(16 * _MIB, min(int(cap * 0.65), cap - 40 * _MIB))


def _vmem_limit_bytes(cap):
    # Scoped-VMEM cap handed to Mosaic: kept well below physical capacity so
    # double buffers + internal scratch always have headroom (never request the
    # whole 64 MiB on v7x).
    return max(24 * _MIB, min(cap - 24 * _MIB, 100 * _MIB))


def _pick_logits_tile(n, c, budget_bytes):
    """Row tile for the attention/logits kernel.

    ~6 live (TN, C) f32 slabs (double-buffered x blocks + a/b/h temporaries).
    """
    tn = budget_bytes // (6 * 4 * max(c, 1))
    tn = min(tn, 4096)
    if tn >= n:
        return n                       # single tile: block dims == full dims
    return max(128, (tn // 128) * 128)  # lane-dense output block needs %128


def _pick_row_tile(n, budget_bytes, cap):
    """Row tile for the top-k kernel.

    ~5 live (TM, Npad) 4-byte slabs (keys, col_ids, dist, compare temp, slack).
    """
    n8 = _round_up(n, 8)
    max_tm = 512 if cap >= 96 * _MIB else 256
    tm = budget_bytes // (5 * 4 * n8)
    tm = max(8, min(max_tm, (tm // 8) * 8))
    return min(tm, n8)


# ---------------------------------------------------------------------------
# Kernel 1: (gated) attention net -> per-point logit, tiled over N,
#           emitted lane-dense as (B, 1, N).
# ---------------------------------------------------------------------------
def _attn_logits_kernel(x_ref, *refs, gate):
    if gate:
        wa_ref, ba_ref, wb_ref, bb_ref, wc_ref, bc_ref, out_ref = refs
    else:
        wa_ref, ba_ref, wc_ref, bc_ref, out_ref = refs
    x = x_ref[0]                                                     # (TN, C)
    h = jnp.tanh(jnp.dot(x, wa_ref[...],
                         preferred_element_type=jnp.float32) + ba_ref[...])
    if gate:
        h = h * jax.nn.sigmoid(jnp.dot(x, wb_ref[...],
                                       preferred_element_type=jnp.float32)
                               + bb_ref[...])
    # (C -> 1) projection contracted on the last dim of both operands so the
    # result is produced lane-dense (1, TN) with no in-kernel relayout.
    logits = lax.dot_general(wc_ref[...], h, (((1,), (1,)), ((), ())),
                             preferred_element_type=jnp.float32) + bc_ref[...]
    out_ref[0] = logits                                              # (1, TN)


# ---------------------------------------------------------------------------
# Kernel 2: softmax over the points axis (torch F.softmax(A, dim=1)),
#           entirely lane-dense.
# ---------------------------------------------------------------------------
def _softmax_kernel(logit_ref, a_ref):
    z = logit_ref[0]                                                 # (1, N)
    m = jnp.max(z, axis=1, keepdims=True)
    e = jnp.exp(z - m)
    a_ref[0] = e / jnp.sum(e, axis=1, keepdims=True)


# ---------------------------------------------------------------------------
# Kernel 3: row-tiled |A_i - A_j| + iterative k-smallest via packed-key mins.
#   a_col_ref : (1, TM, 1)   query-row values of this tile (column layout)
#   a_row_ref : (1, 1, Np)   all (padded) point values, lane-dense
#   idx_ref   : (1, TM, k)   selected neighbour indices
# ---------------------------------------------------------------------------
def _knn_topk_kernel(a_col_ref, a_row_ref, idx_ref, *, k, tm, idx_bits):
    m = pl.program_id(1)
    a_col = a_col_ref[0]                                             # (TM, 1)
    a_row = a_row_ref[0]                                             # (1, Np)
    n_pad = a_row.shape[-1]

    row_ids = m * tm + lax.broadcasted_iota(jnp.int32, (tm, 1), 0)   # global rows
    col_ids = lax.broadcasted_iota(jnp.int32, (tm, n_pad), 1)

    # cdist with 1-dim features == |A_i - A_j|; pure VPU broadcast.
    dist = jnp.abs(a_col - a_row)                                    # (TM, Np)

    # Packed monotone key = (truncated dist bits) | column index:
    # dist >= 0 so bitcast(dist, int32) preserves ordering; one jnp.min per
    # k-step then yields both the smallest distance and its lowest index.
    low_mask = jnp.int32((1 << idx_bits) - 1)
    hi_mask = jnp.int32(~((1 << idx_bits) - 1))
    keys = (pltpu.bitcast(dist, jnp.int32) & hi_mask) | col_ids
    big = jnp.int32(jnp.iinfo(jnp.int32).max)

    # Neighbour 0 is always the point itself (diagonal distance is exactly 0):
    # emit it directly and pre-mask the diagonal -> one fewer full pass.
    keys = jnp.where(col_ids == row_ids, big, keys)
    sel_cols = [row_ids]

    # k is small and static -> unrolled loop; (truncated-dist, lowest-index)
    # lexicographic tie-break.
    for _ in range(k - 1):
        kmin = jnp.min(keys, axis=1, keepdims=True)                  # (TM, 1)
        sel_cols.append(kmin & low_mask)
        keys = jnp.where(keys == kmin, big, keys)

    idx_ref[0] = jnp.concatenate(sel_cols, axis=1).astype(jnp.int32)  # (TM, k)


# ---------------------------------------------------------------------------
# Wrapper module
# ---------------------------------------------------------------------------
class AttenMatrixPallas:
    """JAX/Pallas port of atten_matrix (gate=True/False, eval mode).
    Indices are int32 (torch returns int64)."""

    def __init__(self, in_channels, gate=True, k=16, dropout=0.0, key=None):
        # TODO(synk): training-mode nn.Dropout is not implemented (eval-mode
        # identity; the module default dropout=0.0 matches this).
        self.k = int(k)
        self.gate = bool(gate)
        C = in_channels
        if key is None:
            key = jax.random.PRNGKey(42)
        k1, k2, k3, k4, k5, k6 = jax.random.split(key, 6)
        s = 1.0 / (C ** 0.5)
        # Attn_Net(_Gated) parameters stored (in, out); the (C -> 1) projection
        # is kept as a (1, C) row.
        self.wa = jax.random.uniform(k1, (C, C), jnp.float32, -s, s)
        self.ba = jax.random.uniform(k2, (1, C), jnp.float32, -s, s)
        self.wb = jax.random.uniform(k3, (C, C), jnp.float32, -s, s)
        self.bb = jax.random.uniform(k4, (1, C), jnp.float32, -s, s)
        self.wc = jax.random.uniform(k5, (1, C), jnp.float32, -s, s)
        self.bc = jax.random.uniform(k6, (1, 1), jnp.float32, -s, s)

    # ---- kernels 1+2: attention net + softmax -> lane-dense A (B, 1, N) ----
    def attention(self, x):
        B, N, C = x.shape
        cap = _vmem_capacity_bytes()
        budget = _tile_budget_bytes(cap)
        vlim = _vmem_limit_bytes(cap)
        tn = _pick_logits_tile(N, C, budget)

        if self.gate:
            weight_args = (self.wa, self.ba, self.wb, self.bb, self.wc, self.bc)
        else:
            # gate=False: do not ship the unused gate weights at all.
            weight_args = (self.wa, self.ba, self.wc, self.bc)
        weight_specs = [pl.BlockSpec(w.shape, lambda b, t: (0, 0))
                        for w in weight_args]

        logits = pl.pallas_call(
            functools.partial(_attn_logits_kernel, gate=self.gate),
            out_shape=jax.ShapeDtypeStruct((B, 1, N), jnp.float32),
            grid=(B, pl.cdiv(N, tn)),
            in_specs=[pl.BlockSpec((1, tn, C), lambda b, t: (b, t, 0))]
                     + weight_specs,
            out_specs=pl.BlockSpec((1, 1, tn), lambda b, t: (b, 0, t)),
            compiler_params=pltpu.CompilerParams(
                dimension_semantics=("parallel", "parallel"),
                vmem_limit_bytes=vlim),
        )(x, *weight_args)

        return pl.pallas_call(
            _softmax_kernel,
            out_shape=jax.ShapeDtypeStruct((B, 1, N), jnp.float32),
            grid=(B,),
            in_specs=[pl.BlockSpec((1, 1, N), lambda b: (b, 0, 0))],
            out_specs=pl.BlockSpec((1, 1, N), lambda b: (b, 0, 0)),
            compiler_params=pltpu.CompilerParams(
                dimension_semantics=("parallel",),
                vmem_limit_bytes=vlim),
        )(logits)

    def __call__(self, x):
        B, N, C = x.shape
        k = self.k
        assert 1 <= k <= N, f"k={k} must be in [1, N={N}]"

        A_row = self.attention(x)                                    # (B, 1, N)

        cap = _vmem_capacity_bytes()
        budget = _tile_budget_bytes(cap)
        vlim = _vmem_limit_bytes(cap)
        tm = _pick_row_tile(N, budget, cap)
        n_pad = _round_up(N, tm)
        idx_bits = max(1, int(n_pad - 1).bit_length())

        # Pad the points axis up to a multiple of TM with a huge sentinel value
        # (> any real |A_i - A_j| <= 1) so padded columns are never selected;
        # padded query rows are sliced away below.
        if n_pad != N:
            A_row_p = jnp.pad(A_row, ((0, 0), (0, 0), (0, n_pad - N)),
                              constant_values=1e6)
        else:
            A_row_p = A_row
        # Tiny wrapper-side transpose (B*Np floats) to feed the (TM,1) query
        # column of each tile without any in-kernel relayout.
        A_col_p = jnp.swapaxes(A_row_p, 1, 2)                        # (B, Np, 1)

        nn_idx = pl.pallas_call(
            functools.partial(_knn_topk_kernel, k=k, tm=tm, idx_bits=idx_bits),
            out_shape=jax.ShapeDtypeStruct((B, n_pad, k), jnp.int32),
            grid=(B, n_pad // tm),
            in_specs=[
                pl.BlockSpec((1, tm, 1), lambda b, m: (b, m, 0)),     # query rows
                pl.BlockSpec((1, 1, n_pad), lambda b, m: (b, 0, 0)),  # all points
            ],
            out_specs=pl.BlockSpec((1, tm, k), lambda b, m: (b, m, 0)),
            compiler_params=pltpu.CompilerParams(
                dimension_semantics=("parallel", "parallel"),
                vmem_limit_bytes=vlim),
        )(A_col_p, A_row_p)[:, :N, :]

        # --- glue: center indices + stack -----------------------------------
        center_idx = jnp.broadcast_to(
            jnp.arange(N, dtype=jnp.int32)[None, :, None], (B, N, k))
        return jnp.stack((nn_idx, center_idx), axis=0)               # (2, B, N, k)


if __name__ == "__main__":
    # N deliberately not a multiple of 8 so the pad-to-TM path is exercised.
    B, N, C = 2, 20, 8
    k = 4

    key = jax.random.PRNGKey(0)
    kx, kp = jax.random.split(key)
    x = jax.random.normal(kx, (B, N, C), dtype=jnp.float32)

    graph = AttenMatrixPallas(in_channels=C, gate=True, k=k, key=kp)
    edge_index = jax.block_until_ready(graph(x))

    # --- structural checks ---------------------------------------------------
    assert edge_index.shape == (2, B, N, k), edge_index.shape
    assert edge_index.dtype == jnp.int32
    assert bool(jnp.all(edge_index[1] ==
                        jnp.arange(N, dtype=jnp.int32)[None, :, None]))
    assert bool(jnp.all(edge_index[0, :, :, 0] ==
                        jnp.arange(N, dtype=jnp.int32)[None, :]))
    assert bool(jnp.all(edge_index[0] >= 0)) and bool(jnp.all(edge_index[0] < N))

    # --- kernel 1+2 numerical check vs a pure-JAX reference -------------------
    A_kernel = jax.block_until_ready(graph.attention(x))             # (B, 1, N)
    h_ref = (jnp.tanh(x @ graph.wa + graph.ba)
             * jax.nn.sigmoid(x @ graph.wb + graph.bb))
    logits_ref = jnp.sum(h_ref * graph.wc, axis=-1, keepdims=True) + graph.bc
    A_ref = jax.nn.softmax(logits_ref, axis=1)                       # (B, N, 1)
    assert bool(jnp.allclose(A_kernel[:, 0, :], A_ref[:, :, 0],
                             atol=3e-3, rtol=3e-2)), "attention/softmax mismatch"

    # --- top-k check against the kernel's own A (matmul-precision agnostic) ---
    A_k = A_kernel[:, 0, :]                                          # (B, N)
    dist_k = jnp.abs(A_k[:, :, None] - A_k[:, None, :])              # (B, N, N)
    ref_vals = -jax.lax.top_k(-dist_k, k)[0]                         # k smallest, ascending
    got_vals = jnp.take_along_axis(dist_k, edge_index[0], axis=-1)
    assert bool(jnp.allclose(got_vals, ref_vals, atol=1e-5)), "top-k distance mismatch"

    # --- gate=False (Attn_Net) path smoke test --------------------------------
    graph_ng = AttenMatrixPallas(in_channels=C, gate=False, k=k, key=kp)
    ei_ng = jax.block_until_ready(graph_ng(x))
    assert ei_ng.shape == (2, B, N, k)
    assert bool(jnp.all(ei_ng[0, :, :, 0] ==
                        jnp.arange(N, dtype=jnp.int32)[None, :]))

    print("KERNEL_OK")
</pallas_src>

<mosaic_0001>
module attributes {stable_mosaic.version = 11 : i64} {
  func.func @_attn_logits_kernel(%arg0: i32, %arg1: i32, %arg2: memref<1x20x8xf32, #tpu.memory_space<vmem>>, %arg3: memref<8x8xf32, #tpu.memory_space<vmem>>, %arg4: memref<1x8xf32, #tpu.memory_space<vmem>>, %arg5: memref<8x8xf32, #tpu.memory_space<vmem>>, %arg6: memref<1x8xf32, #tpu.memory_space<vmem>>, %arg7: memref<1x8xf32, #tpu.memory_space<vmem>>, %arg8: memref<1x1xf32, #tpu.memory_space<vmem>>, %arg9: memref<1x1x20xf32, #tpu.memory_space<vmem>>) attributes {dimension_semantics = [#tpu.dimension_semantics<parallel>, #tpu.dimension_semantics<parallel>], iteration_bounds = array<i64: 2, 1>, scalar_prefetch = 0 : i64, scratch_operands = 0 : i64, tpu.core_type = #tpu.core_type<tc>, window_params = [{transform_indices = @transform_0, window_bounds = array<i64: 1, 20, 8>}, {pipeline_mode = #tpu.pipeline_mode<synchronous>, transform_indices = @transform_1, window_bounds = array<i64: 8, 8>}, {pipeline_mode = #tpu.pipeline_mode<synchronous>, transform_indices = @transform_2, window_bounds = array<i64: 1, 8>}, {pipeline_mode = #tpu.pipeline_mode<synchronous>, transform_indices = @transform_3, window_bounds = array<i64: 8, 8>}, {pipeline_mode = #tpu.pipeline_mode<synchronous>, transform_indices = @transform_4, window_bounds = array<i64: 1, 8>}, {pipeline_mode = #tpu.pipeline_mode<synchronous>, transform_indices = @transform_5, window_bounds = array<i64: 1, 8>}, {pipeline_mode = #tpu.pipeline_mode<synchronous>, transform_indices = @transform_6, window_bounds = array<i64: 1, 1>}, {transform_indices = @transform_7, window_bounds = array<i64: 1, 1, 20>}]} {
    %c0 = arith.constant 0 : index
    %c0_0 = arith.constant 0 : index
    %c0_1 = arith.constant 0 : index
    %0 = vector.load %arg2[%c0, %c0_0, %c0_1] : memref<1x20x8xf32, #tpu.memory_space<vmem>>, vector<1x20x8xf32>
    %1 = vector.shape_cast %0 : vector<1x20x8xf32> to vector<20x8xf32>
    %c0_2 = arith.constant 0 : index
    %c0_3 = arith.constant 0 : index
    %2 = vector.load %arg3[%c0_2, %c0_3] : memref<8x8xf32, #tpu.memory_space<vmem>>, vector<8x8xf32>
    %cst = arith.constant dense<0.000000e+00> : vector<20x8xf32>
    %3 = tpu.matmul %1, %2, %cst {dimension_numbers = #tpu.dot_dimension_numbers<[1], [0], [0], [1], [0, 0, 1, 1], [], []>} : vector<20x8xf32>, vector<8x8xf32>, vector<20x8xf32> -> vector<20x8xf32>
    %c0_4 = arith.constant 0 : index
    %c0_5 = arith.constant 0 : index
    %4 = vector.load %arg4[%c0_4, %c0_5] : memref<1x8xf32, #tpu.memory_space<vmem>>, vector<1x8xf32>
    %5 = vector.broadcast %4 : vector<1x8xf32> to vector<20x8xf32>
    %6 = arith.addf %3, %5 : vector<20x8xf32>
    %7 = math.tanh %6 : vector<20x8xf32>
    %c0_6 = arith.constant 0 : index
    %c0_7 = arith.constant 0 : index
    %8 = vector.load %arg5[%c0_6, %c0_7] : memref<8x8xf32, #tpu.memory_space<vmem>>, vector<8x8xf32>
    %cst_8 = arith.constant dense<0.000000e+00> : vector<20x8xf32>
    %9 = tpu.matmul %1, %8, %cst_8 {dimension_numbers = #tpu.dot_dimension_numbers<[1], [0], [0], [1], [0, 0, 1, 1], [], []>} : vector<20x8xf32>, vector<8x8xf32>, vector<20x8xf32> -> vector<20x8xf32>
    %c0_9 = arith.constant 0 : index
    %c0_10 = arith.constant 0 : index
    %10 = vector.load %arg6[%c0_9, %c0_10] : memref<1x8xf32, #tpu.memory_space<vmem>>, vector<1x8xf32>
    %11 = vector.broadcast %10 : vector<1x8xf32> to vector<20x8xf32>
    %12 = arith.addf %9, %11 : vector<20x8xf32>
    %13 = arith.negf %12 : vector<20x8xf32>
    %14 = math.exp %13 : vector<20x8xf32>
    %cst_11 = arith.constant 1.000000e+00 : f32
    %15 = vector.broadcast %cst_11 : f32 to vector<20x8xf32>
    %16 = arith.addf %15, %14 : vector<20x8xf32>
    %17 = arith.divf %15, %16 : vector<20x8xf32>
    %18 = arith.mulf %7, %17 : vector<20x8xf32>
    %c0_12 = arith.constant 0 : index
    %c0_13 = arith.constant 0 : index
    %19 = vector.load %arg7[%c0_12, %c0_13] : memref<1x8xf32, #tpu.memory_space<vmem>>, vector<1x8xf32>
    %cst_14 = arith.constant dense<0.000000e+00> : vector<1x20xf32>
    %20 = tpu.matmul %19, %18, %cst_14 {dimension_numbers = #tpu.dot_dimension_numbers<[1], [1], [0], [0], [0, 0, 1, 0], [], []>} : vector<1x8xf32>, vector<20x8xf32>, vector<1x20xf32> -> vector<1x20xf32>
    %c0_15 = arith.constant 0 : index
    %c0_16 = arith.constant 0 : index
    %21 = vector.load %arg8[%c0_15, %c0_16] : memref<1x1xf32, #tpu.memory_space<vmem>>, vector<1x1xf32>
    %22 = vector.broadcast %21 : vector<1x1xf32> to vector<1x20xf32>
    %23 = arith.addf %20, %22 : vector<1x20xf32>
    %c0_17 = arith.constant 0 : index
    %c0_18 = arith.constant 0 : index
    %c0_19 = arith.constant 0 : index
    %24 = vector.load %arg9[%c0_17, %c0_18, %c0_19] : memref<1x1x20xf32, #tpu.memory_space<vmem>>, vector<1x1x20xf32>
    %25 = vector.shape_cast %24 : vector<1x1x20xf32> to vector<1x20xf32>
    %26 = vector.shape_cast %23 : vector<1x20xf32> to vector<1x1x20xf32>
    tpu.vector_store %arg9[%c0_17, %c0_18, %c0_19], %26 {strides = array<i32>} : memref<1x1x20xf32, #tpu.memory_space<vmem>>, vector<1x1x20xf32>,
    return
  }
  func.func @transform_0(%arg0: i32, %arg1: i32) -> (i32, i32, i32) {
    %c0_i32 = arith.constant 0 : i32
    %c0_i32_0 = arith.constant 0 : i32
    return %arg0, %arg1, %c0_i32 : i32, i32, i32
  }
  func.func @transform_1(%arg0: i32, %arg1: i32) -> (i32, i32) {
    %c0_i32 = arith.constant 0 : i32
    %c0_i32_0 = arith.constant 0 : i32
    %c0_i32_1 = arith.constant 0 : i32
    return %c0_i32, %c0_i32_0 : i32, i32
  }
  func.func @transform_2(%arg0: i32, %arg1: i32) -> (i32, i32) {
    %c0_i32 = arith.constant 0 : i32
    %c0_i32_0 = arith.constant 0 : i32
    %c0_i32_1 = arith.constant 0 : i32
    return %c0_i32, %c0_i32_0 : i32, i32
  }
  func.func @transform_3(%arg0: i32, %arg1: i32) -> (i32, i32) {
    %c0_i32 = arith.constant 0 : i32
    %c0_i32_0 = arith.constant 0 : i32
    %c0_i32_1 = arith.constant 0 : i32
    return %c0_i32, %c0_i32_0 : i32, i32
  }
  func.func @transform_4(%arg0: i32, %arg1: i32) -> (i32, i32) {
    %c0_i32 = arith.constant 0 : i32
    %c0_i32_0 = arith.constant 0 : i32
    %c0_i32_1 = arith.constant 0 : i32
    return %c0_i32, %c0_i32_0 : i32, i32
  }
  func.func @transform_5(%arg0: i32, %arg1: i32) -> (i32, i32) {
    %c0_i32 = arith.constant 0 : i32
    %c0_i32_0 = arith.constant 0 : i32
    %c0_i32_1 = arith.constant 0 : i32
    return %c0_i32, %c0_i32_0 : i32, i32
  }
  func.func @transform_6(%arg0: i32, %arg1: i32) -> (i32, i32) {
    %c0_i32 = arith.constant 0 : i32
    %c0_i32_0 = arith.constant 0 : i32
    %c0_i32_1 = arith.constant 0 : i32
    return %c0_i32, %c0_i32_0 : i32, i32
  }
  func.func @transform_7(%arg0: i32, %arg1: i32) -> (i32, i32, i32) {
    %c0_i32 = arith.constant 0 : i32
    %c0_i32_0 = arith.constant 0 : i32
    return %arg0, %c0_i32, %arg1 : i32, i32, i32
  }
}

</mosaic_0001>

<llo_original>
// kernel: tpu_custom_call.1
$region0: #{tpu_custom_call.1}
  #allocation0 [shape = 'u32[]', space=smem, size = 0x4, offset = 0x4, fixed_abs, tag = 'smem constant byte address 0x4 - core index']
  #allocation1 [shape = 'u32[72,128]{1,0:T(1,128)}', space=vmem, size = 0x9000, scoped, tag = 'internal scratch']
  #allocation2 [shape = 'f32[1,1]{1,0:T(1,128)S(1)}', space=vmem, size = 0x200, scoped, tag = 'scoped memory for tpu_custom_call.1']
  %s0 = inlined_call_operand.vmem [shape: f32[2,20,8], index: 0, kind: input, shape index: {}]
  %s1 = inlined_call_operand.vmem [shape: f32[8,8], index: 1, kind: input, shape index: {}]
  %s2 = inlined_call_operand.vmem [shape: f32[1,8], index: 2, kind: input, shape index: {}]
  %s3 = inlined_call_operand.vmem [shape: f32[8,8], index: 3, kind: input, shape index: {}]
  %s4 = inlined_call_operand.vmem [shape: f32[1,8], index: 4, kind: input, shape index: {}]
  %s5 = inlined_call_operand.vmem [shape: f32[1,8], index: 5, kind: input, shape index: {}]
  %s6 = inlined_call_operand.<no memory space> [shape: f32[1,1], index: 6, kind: input, shape index: {}]
  %s7 = inlined_call_operand.hbm [shape: f32[2,1,20], index: 7, kind: output, shape index: {}]
  %s8 = sld [smem:[#allocation0]]
  $region61: #{tpu_custom_call.1} parent=0
    _
  %s10 = ssub.s32 1, %s8
  %s11 = scalar_select 0, %s10, %s8
  %v12 = vstv %s6
  %13 = vst [vmem:[#allocation2] sm:$0x1] %v12
  $region1: #{tpu_custom_call.1} parent=0
    #allocation3 [shape = 'u8[1024]{0}', space=vmem, size = 0x400, scoped, tag = 'output window, operand 0']
    #allocation4 [shape = 's32[2]{0}', space=sflag, size = 0x8, scoped, tag = 'scoped memory for tpu_custom_call.1']
    %14 = vsyncpa [#allocation4], 0
    %s15 = scalar_lea.sflag [#allocation4], 1
    %16 = vsyncpa %s15, 0
    loop: start=0, step=1, limit=4
    $region2: #{tpu_custom_call.1} parent=1 // loop_pre_header
      _
    $region3: #{tpu_custom_call.1} parent=1 // loop_header
      %s18 = sphi 0, %s22
      %p19 = scmp.ge.s32.totalorder %s18, 4
      %s25 = sphi 0, %s37
      %s26 = sphi 0, %s33
      %s27 = sphi 0, %s25
      %s28 = sphi 0, %s26
      %s29 = sphi 0, %s27
      %s30 = sphi 0, %s28
      %s42 = sphi 0, %s44
      %s45 = sphi 0, %s42
      %s46 = sphi 0, %s45
      %s62 = sphi 0, %s46
      %s66 = sphi 0, %s66
      %s68 = sphi 0, %s66
      %s69 = sphi 0, %s68
      %s83 = sphi 0, %s69
      %s87 = sphi 0, %s87
      %s89 = sphi 0, %s87
      %s90 = sphi 0, %s89
      %s104 = sphi 0, %s90
      %s108 = sphi 0, %s108
      %s110 = sphi 0, %s108
      %s111 = sphi 0, %s110
      %s125 = sphi 0, %s111
      %s129 = sphi 0, %s129
      %s131 = sphi 0, %s129
      %s132 = sphi 0, %s131
      %s146 = sphi 0, %s132
      %s150 = sphi 0, %s150
      %s152 = sphi 0, %s150
      %s153 = sphi 0, %s152
      %s167 = sphi 0, %s153
      %s171 = sphi 0, %s171
      %s173 = sphi 0, %s171
      %s174 = sphi 0, %s173
      %s188 = sphi 0, %s174
      %s196 = sphi 0, %s198
      %s199 = sphi 0, %s196
      %s200 = sphi 0, %s199
      %s216 = sphi 0, %s200
    $region4: #{tpu_custom_call.1} parent=1 // loop_header_branch
      %21 = sbr.rel (%p19) target = $region8
    $region5: #{tpu_custom_call.1} parent=1 // loop_body
      %s23 = ssub.s32 %s18, 1
      %s24 = ssub.s32 %s18, 2
      %s31 = sadd.s32 1, %s26
      %p32 = scmp.ge.s32.totalorder %s31, 1
      %s33 = scalar_select %p32, 0, %s31
      %s34 = sadd.s32 1, %s25
      %s35 = scalar_select %p32, %s34, %s25
      %p36 = scmp.ge.s32.totalorder %s35, 2
      %s37 = scalar_select %p36, 0, %s35
      %s38 = ssub.s32 %s25, %s37
      %s39 = ssub.s32 %s26, %s33
      %s40 = sor.u32 %s38, %s39
      %p41 = scmp.eq.s32.totalorder %s40, 0
      %s43 = sadd.s32 %s42, 1
      %s44 = scalar_select %p41, %s42, %s43
      %p47 = pneg %p41
      %p48 = scmp.eq.s32.totalorder %s18, 1
      %p49 = por %p47, %p48
      %p50 = scmp.ne.s32.totalorder %s42, %s45
      %p51 = scmp.eq.s32.totalorder %s18, 0
      %p52 = por %p50, %p51
      %p53 = scmp.ne.s32.totalorder %s42, %s45
      %p54 = scmp.eq.s32.totalorder %s23, 1
      %p55 = por %p53, %p54
      %p56 = scmp.ne.s32.totalorder %s45, %s46
      %p57 = scmp.eq.s32.totalorder %s23, 0
      %p58 = por %p56, %p57
      %p59 = scmp.ne.s32.totalorder %s45, %s46
      %p60 = scmp.eq.s32.totalorder %s24, 1
      %p61 = por %p59, %p60
      %p63 = scmp.ne.s32.totalorder %s46, %s62
      %p64 = scmp.eq.s32.totalorder %s24, 0
      %p65 = por %p63, %p64
      %s67 = sadd.s32 %s66, 1
      %p70 = scmp.eq.s32.totalorder %s18, 1
      %p71 = scmp.ne.s32.totalorder %s66, %s68
      %p72 = scmp.eq.s32.totalorder %s18, 0
      %p73 = por %p71, %p72
      %p74 = scmp.ne.s32.totalorder %s66, %s68
      %p75 = scmp.eq.s32.totalorder %s23, 1
      %p76 = por %p74, %p75
      %p77 = scmp.ne.s32.totalorder %s68, %s69
      %p78 = scmp.eq.s32.totalorder %s23, 0
      %p79 = por %p77, %p78
      %p80 = scmp.ne.s32.totalorder %s68, %s69
      %p81 = scmp.eq.s32.totalorder %s24, 1
      %p82 = por %p80, %p81
      %p84 = scmp.ne.s32.totalorder %s69, %s83
      %p85 = scmp.eq.s32.totalorder %s24, 0
      %p86 = por %p84, %p85
      %s88 = sadd.s32 %s87, 1
      %p91 = scmp.eq.s32.totalorder %s18, 1
      %p92 = scmp.ne.s32.totalorder %s87, %s89
      %p93 = scmp.eq.s32.totalorder %s18, 0
      %p94 = por %p92, %p93
      %p95 = scmp.ne.s32.totalorder %s87, %s89
      %p96 = scmp.eq.s32.totalorder %s23, 1
      %p97 = por %p95, %p96
      %p98 = scmp.ne.s32.totalorder %s89, %s90
      %p99 = scmp.eq.s32.totalorder %s23, 0
      %p100 = por %p98, %p99
      %p101 = scmp.ne.s32.totalorder %s89, %s90
      %p102 = scmp.eq.s32.totalorder %s24, 1
      %p103 = por %p101, %p102
      %p105 = scmp.ne.s32.totalorder %s90, %s104
      %p106 = scmp.eq.s32.totalorder %s24, 0
      %p107 = por %p105, %p106
      %s109 = sadd.s32 %s108, 1
      %p112 = scmp.eq.s32.totalorder %s18, 1
      %p113 = scmp.ne.s32.totalorder %s108, %s110
      %p114 = scmp.eq.s32.totalorder %s18, 0
      %p115 = por %p113, %p114
      %p116 = scmp.ne.s32.totalorder %s108, %s110
      %p117 = scmp.eq.s32.totalorder %s23, 1
      %p118 = por %p116, %p117
      %p119 = scmp.ne.s32.totalorder %s110, %s111
      %p120 = scmp.eq.s32.totalorder %s23, 0
      %p121 = por %p119, %p120
      %p122 = scmp.ne.s32.totalorder %s110, %s111
      %p123 = scmp.eq.s32.totalorder %s24, 1
      %p124 = por %p122, %p123
      %p126 = scmp.ne.s32.totalorder %s111, %s125
      %p127 = scmp.eq.s32.totalorder %s24, 0
      %p128 = por %p126, %p127
      %s130 = sadd.s32 %s129, 1
      %p133 = scmp.eq.s32.totalorder %s18, 1
      %p134 = scmp.ne.s32.totalorder %s129, %s131
      %p135 = scmp.eq.s32.totalorder %s18, 0
      %p136 = por %p134, %p135
      %p137 = scmp.ne.s32.totalorder %s129, %s131
      %p138 = scmp.eq.s32.totalorder %s23, 1
      %p139 = por %p137, %p138
      %p140 = scmp.ne.s32.totalorder %s131, %s132
      %p141 = scmp.eq.s32.totalorder %s23, 0
      %p142 = por %p140, %p141
      %p143 = scmp.ne.s32.totalorder %s131, %s132
      %p144 = scmp.eq.s32.totalorder %s24, 1
      %p145 = por %p143, %p144
      %p147 = scmp.ne.s32.totalorder %s132, %s146
      %p148 = scmp.eq.s32.totalorder %s24, 0
      %p149 = por %p147, %p148
      %s151 = sadd.s32 %s150, 1
      %p154 = scmp.eq.s32.totalorder %s18, 1
      %p155 = scmp.ne.s32.totalorder %s150, %s152
      %p156 = scmp.eq.s32.totalorder %s18, 0
      %p157 = por %p155, %p156
      %p158 = scmp.ne.s32.totalorder %s150, %s152
      %p159 = scmp.eq.s32.totalorder %s23, 1
      %p160 = por %p158, %p159
      %p161 = scmp.ne.s32.totalorder %s152, %s153
      %p162 = scmp.eq.s32.totalorder %s23, 0
      %p163 = por %p161, %p162
      %p164 = scmp.ne.s32.totalorder %s152, %s153
      %p165 = scmp.eq.s32.totalorder %s24, 1
      %p166 = por %p164, %p165
      %p168 = scmp.ne.s32.totalorder %s153, %s167
      %p169 = scmp.eq.s32.totalorder %s24, 0
      %p170 = por %p168, %p169
      %s172 = sadd.s32 %s171, 1
      %p175 = scmp.eq.s32.totalorder %s18, 1
      %p176 = scmp.ne.s32.totalorder %s171, %s173
      %p177 = scmp.eq.s32.totalorder %s18, 0
      %p178 = por %p176, %p177
      %p179 = scmp.ne.s32.totalorder %s171, %s173
      %p180 = scmp.eq.s32.totalorder %s23, 1
      %p181 = por %p179, %p180
      %p182 = scmp.ne.s32.totalorder %s173, %s174
      %p183 = scmp.eq.s32.totalorder %s23, 0
      %p184 = por %p182, %p183
      %p185 = scmp.ne.s32.totalorder %s173, %s174
      %p186 = scmp.eq.s32.totalorder %s24, 1
      %p187 = por %p185, %p186
      %p189 = scmp.ne.s32.totalorder %s174, %s188
      %p190 = scmp.eq.s32.totalorder %s24, 0
      %p191 = por %p189, %p190
      %s192 = ssub.s32 %s25, %s37
      %s193 = ssub.s32 %s26, %s33
      %s194 = sor.u32 %s192, %s193
      %p195 = scmp.eq.s32.totalorder %s194, 0
      %s197 = sadd.s32 %s196, 1
      %s198 = scalar_select %p195, %s196, %s197
      %p201 = pneg %p195
      %p202 = scmp.eq.s32.totalorder %s18, 1
      %p203 = por %p201, %p202
      %p204 = scmp.ne.s32.totalorder %s196, %s199
      %p205 = scmp.eq.s32.totalorder %s18, 0
      %p206 = por %p204, %p205
      %p207 = scmp.ne.s32.totalorder %s196, %s199
      %p208 = scmp.eq.s32.totalorder %s23, 1
      %p209 = por %p207, %p208
      %p210 = scmp.ne.s32.totalorder %s199, %s200
      %p211 = scmp.eq.s32.totalorder %s23, 0
      %p212 = por %p210, %p211
      %p213 = scmp.ne.s32.totalorder %s199, %s200
      %p214 = scmp.eq.s32.totalorder %s24, 1
      %p215 = por %p213, %p214
      %p217 = scmp.ne.s32.totalorder %s200, %s216
      %p218 = scmp.eq.s32.totalorder %s24, 0
      %p219 = por %p217, %p218
      %p220 = scmp.le.s32.totalorder 1, %s18
      %p221 = scmp.lt.s32.totalorder %s18, 3
      %p222 = pnand %p220, %p221
      %p223 = pneg %p222
      // Predicated region
      $region9: #{tpu_custom_call.1} parent=5 // pred_check
        _
      $region10: #{tpu_custom_call.1} parent=5 // pred_check_branch
        %225 = sbr.rel (%p222) target = $region12
      $region11: #{tpu_custom_call.1} parent=5 // pred_region
        %s226 = ssub.s32 %s18, 1
        // Predicated region
        $region13: #{tpu_custom_call.1} parent=11 // pred_check
          %p227 = pneg %p79
        $region14: #{tpu_custom_call.1} parent=11 // pred_check_branch
          %229 = sbr.rel (%p227) target = $region16
        $region15: #{tpu_custom_call.1} parent=11 // pred_region
          _
        $region16: #{tpu_custom_call.1} parent=11 // pred_fallthru
          _
        // Predicated region
        $region17: #{tpu_custom_call.1} parent=11 // pred_check
          %p230 = pneg %p100
        $region18: #{tpu_custom_call.1} parent=11 // pred_check_branch
          %232 = sbr.rel (%p230) target = $region20
        $region19: #{tpu_custom_call.1} parent=11 // pred_region
          _
        $region20: #{tpu_custom_call.1} parent=11 // pred_fallthru
          _
        // Predicated region
        $region21: #{tpu_custom_call.1} parent=11 // pred_check
          %p233 = pneg %p121
        $region22: #{tpu_custom_call.1} parent=11 // pred_check_branch
          %235 = sbr.rel (%p233) target = $region24
        $region23: #{tpu_custom_call.1} parent=11 // pred_region
          _
        $region24: #{tpu_custom_call.1} parent=11 // pred_fallthru
          _
        // Predicated region
        $region25: #{tpu_custom_call.1} parent=11 // pred_check
          %p236 = pneg %p142
        $region26: #{tpu_custom_call.1} parent=11 // pred_check_branch
          %238 = sbr.rel (%p236) target = $region28
        $region27: #{tpu_custom_call.1} parent=11 // pred_region
          _
        $region28: #{tpu_custom_call.1} parent=11 // pred_fallthru
          _
        // Predicated region
        $region29: #{tpu_custom_call.1} parent=11 // pred_check
          %p239 = pneg %p163
        $region30: #{tpu_custom_call.1} parent=11 // pred_check_branch
          %241 = sbr.rel (%p239) target = $region32
        $region31: #{tpu_custom_call.1} parent=11 // pred_region
          _
        $region32: #{tpu_custom_call.1} parent=11 // pred_fallthru
          _
        // Predicated region
        $region33: #{tpu_custom_call.1} parent=11 // pred_check
          %p242 = pneg %p184
        $region34: #{tpu_custom_call.1} parent=11 // pred_check_branch
          %244 = sbr.rel (%p242) target = $region36
        $region35: #{tpu_custom_call.1} parent=11 // pred_region
          _
        $region36: #{tpu_custom_call.1} parent=11 // pred_fallthru
          _
      $region12: #{tpu_custom_call.1} parent=5 // pred_fallthru
        _
      %p245 = scmp.lt.s32.totalorder %s18, 2
      // Predicated region
      $region37: #{tpu_custom_call.1} parent=5 // pred_check
        %p246 = pneg %p245
      $region38: #{tpu_custom_call.1} parent=5 // pred_check_branch
        %248 = sbr.rel (%p246) target = $region40
      $region39: #{tpu_custom_call.1} parent=5 // pred_region
        // Predicated region
        $region41: #{tpu_custom_call.1} parent=39 // pred_check
          %p249 = pneg %p52
        $region42: #{tpu_custom_call.1} parent=39 // pred_check_branch
          %251 = sbr.rel (%p249) target = $region44
        $region43: #{tpu_custom_call.1} parent=39 // pred_region
          %s252 = smul.u32 3, %s26
          %p253 = scmp.lt.s32.totalorder %s25, 1
          %s254 = scalar_select %p253, %s25, 1
          %p255 = scmp.lt.s32.totalorder %s252, 2
          %s256 = scalar_select %p255, %s252, 2
          %s257 = smul.addr %s254, 3
          %s258 = sadd.s32 %s256, %s257
          %s259 = smul.addr %s258, 8
          %s260 = scalar_lea.vmem %s0, %s259
          %s261 = smul.u32 3, %s26
        $region44: #{tpu_custom_call.1} parent=39 // pred_fallthru
          _
      $region40: #{tpu_custom_call.1} parent=5 // pred_fallthru
        _
      %p262 = scmp.le.s32.totalorder 1, %s18
      %p263 = scmp.lt.s32.totalorder %s18, 3
      %p264 = pnand %p262, %p263
      %p265 = pneg %p264
      // Predicated region
      $region45: #{tpu_custom_call.1} parent=5 // pred_check
        _
      $region46: #{tpu_custom_call.1} parent=5 // pred_check_branch
        %267 = sbr.rel (%p264) target = $region48
      $region47: #{tpu_custom_call.1} parent=5 // pred_region
        %s268 = ssub.s32 %s18, 1
        %s269 = smul.u32 3, %s28
        %p270 = scmp.lt.s32.totalorder %s27, 1
        %s271 = scalar_select %p270, %s27, 1
        %p272 = scmp.lt.s32.totalorder %s269, 2
        %s273 = scalar_select %p272, %s269, 2
        %s274 = smul.addr %s271, 3
        %s275 = sadd.s32 %s273, %s274
        %s276 = smul.addr %s275, 8
        %s277 = scalar_lea.vmem %s0, %s276
        %p278 = pneg %p58
        %p279 = pneg %p55
        %p280 = pneg %p79
        %p281 = pneg %p76
        %p282 = pneg %p100
        %p283 = pneg %p97
        %p284 = pneg %p121
        %p285 = pneg %p118
        %p286 = pneg %p142
        %p287 = pneg %p139
        %p288 = pneg %p163
        %p289 = pneg %p160
        %p290 = pneg %p184
        %p291 = pneg %p181
        %p292 = pneg %p212
        %p293 = pneg %p209
        %s294 = sand.u32 %s199, 1
        %s295 = scalar_lea.sflag [#allocation4], %s294
        %s296 = sand.u32 %s199, 1
        %s297 = scalar_lea.vmem [#allocation3], %s296
        %s298 = smul.u32 3, %s28
        %p299 = scmp.lt.s32.totalorder %s27, 1
        %s300 = scalar_select %p299, %s27, 1
        %p301 = scmp.lt.s32.totalorder %s298, 2
        %s302 = scalar_select %p301, %s298, 2
        %s303 = smul.addr %s300, 3
        %s304 = sadd.s32 %s302, %s303
        %s305 = smul.addr %s304, 8
        %s306 = scalar_lea.vmem %s0, %s305
        %s307 = smul.u32 3, %s28
        %v308 = vld [vmem:[%s306] sm:$0xff]
        %v309 = vld [vmem:[%s306 + $0x8] sm:$0xff]
        %v310 = vld [vmem:[%s306 + $0x10] sm:$0xf]
        %v311 = vld [vmem:[%s1] sm:$0xff]
        %v312 = vld [vmem:[%s2] sm:$0x1]
        %v314 = vperm.slane %v312, 0
        %vm316 = vcmask 64512
        %v318 = vsel %vm316, %v308, 0
        %v321 = vsel %vm316, %v309, 0
        %v324 = vsel %vm316, %v310, 0
        %326 = vmatpush.msra.mxu0 0.0
        %327 = vmatpush.msra.mxu0 0.0
        %328 = vmatpush.msra.mxu0 0.0
        %329 = vmatpush.msra.mxu0 0.0
        %330 = vmatpush.msra.mxu0 0.0
        %331 = vmatpush.msra.mxu0 0.0
        %332 = vmatpush.msra.mxu0 0.0
        %333 = vmatpush.msra.mxu0 0.0
        %334 = vmatpush.msra.mxu0 0.0
        %335 = vmatpush.msra.mxu0 0.0
        %336 = vmatpush.msra.mxu0 0.0
        %337 = vmatpush.msra.mxu0 0.0
        %338 = vmatpush.msra.mxu0 0.0
        %339 = vmatpush.msra.mxu0 0.0
        %340 = vmatpush.msra.mxu0 0.0
        %341 = vmatpush.msra.mxu0 %v311
        %342 = vmatmul.f32.gmra.mxu0 %v318
        %v343 = vpop.f32.mrf.mxu0
        %v344 = vadd.f32 %v314, %v343
        %345 = vmatmul.f32.gmra.mxu0 %v321
        %v346 = vpop.f32.mrf.mxu0
        %v347 = vadd.f32 %v314, %v346
        %348 = vmatmul.f32.gmra.mxu0 %v324
        %v349 = vpop.f32.mrf.mxu0
        %v350 = vadd.f32 %v314, %v349
        %351 = vdwg.mxu0
        %v352 = vtanh.pop %v344
        %v353 = vtanh.pop %v347
        %v354 = vtanh.pop %v350
        %v355 = vld [vmem:[%s3] sm:$0xff]
        %v356 = vld [vmem:[%s4] sm:$0x1]
        %v358 = vperm.slane %v356, 0
        %360 = vmatpush.msra.mxu0 0.0
        %361 = vmatpush.msra.mxu0 0.0
        %362 = vmatpush.msra.mxu0 0.0
        %363 = vmatpush.msra.mxu0 0.0
        %364 = vmatpush.msra.mxu0 0.0
        %365 = vmatpush.msra.mxu0 0.0
        %366 = vmatpush.msra.mxu0 0.0
        %367 = vmatpush.msra.mxu0 0.0
        %368 = vmatpush.msra.mxu0 0.0
        %369 = vmatpush.msra.mxu0 0.0
        %370 = vmatpush.msra.mxu0 0.0
        %371 = vmatpush.msra.mxu0 0.0
        %372 = vmatpush.msra.mxu0 0.0
        %373 = vmatpush.msra.mxu0 0.0
        %374 = vmatpush.msra.mxu0 0.0
        %375 = vmatpush.msra.mxu0 %v355
        %376 = vmatmul.f32.gmra.mxu0 %v318
        %v377 = vpop.f32.mrf.mxu0
        %v378 = vadd.f32 %v358, %v377
        %379 = vmatmul.f32.gmra.mxu0 %v321
        %v380 = vpop.f32.mrf.mxu0
        %v381 = vadd.f32 %v358, %v380
        %382 = vmatmul.f32.gmra.mxu0 %v324
        %v383 = vpop.f32.mrf.mxu0
        %v384 = vadd.f32 %v358, %v383
        %385 = vdwg.mxu0
        %v386 = vxor.u32 %v378, 2147483648
        %v387 = vxor.u32 %v381, 2147483648
        %v388 = vxor.u32 %v384, 2147483648
        %v389 = vmul.f32 %v386, 1.442695
        %v390 = vpow.pop %v389
        %v391 = vmul.f32 %v387, 1.442695
        %v392 = vpow.pop %v391
        %v393 = vmul.f32 %v388, 1.442695
        %v394 = vpow.pop %v393
        %v395 = vadd.f32 %v390, 1.0
        %v396 = vadd.f32 %v392, 1.0
        %v397 = vadd.f32 %v394, 1.0
        %v398 = vrcp.pop %v395
        %v399 = vmul.f32 %v395, %v398
        %v400 = vsub.f32 1.0, %v399
        %v401 = vmul.f32 %v398, %v400
        %v402 = vadd.f32 %v398, %v401
        %vm403 = vweird.f32 %v395
        %vm404 = vweird.f32 %v398
        %vm405 = vmor %vm403, %vm404
        %v406 = vsel %vm405, %v398, %v402
        %v407 = vand.u32 2147483647, %v395
        %vm408 = vcmp.eq.f32.partialorder %v407, 8.507059e+37
        %v409 = vand.u32 %v395, 2147483648
        %v410 = vor.u32 1.1754944e-38, %v409
        %v411 = vsel %vm408, %v410, %v406
        %v412 = vmul.f32 1.0, %v411
        %v413 = vrcp.pop %v396
        %v414 = vmul.f32 %v396, %v413
        %v415 = vsub.f32 1.0, %v414
        %v416 = vmul.f32 %v413, %v415
        %v417 = vadd.f32 %v413, %v416
        %vm418 = vweird.f32 %v396
        %vm419 = vweird.f32 %v413
        %vm420 = vmor %vm418, %vm419
        %v421 = vsel %vm420, %v413, %v417
        %v422 = vand.u32 2147483647, %v396
        %vm423 = vcmp.eq.f32.partialorder %v422, 8.507059e+37
        %v424 = vand.u32 %v396, 2147483648
        %v425 = vor.u32 1.1754944e-38, %v424
        %v426 = vsel %vm423, %v425, %v421
        %v427 = vmul.f32 1.0, %v426
        %v428 = vrcp.pop %v397
        %v429 = vmul.f32 %v397, %v428
        %v430 = vsub.f32 1.0, %v429
        %v431 = vmul.f32 %v428, %v430
        %v432 = vadd.f32 %v428, %v431
        %vm433 = vweird.f32 %v397
        %vm434 = vweird.f32 %v428
        %vm435 = vmor %vm433, %vm434
        %v436 = vsel %vm435, %v428, %v432
        %v437 = vand.u32 2147483647, %v397
        %vm438 = vcmp.eq.f32.partialorder %v437, 8.507059e+37
        %v439 = vand.u32 %v397, 2147483648
        %v440 = vor.u32 1.1754944e-38, %v439
        %v441 = vsel %vm438, %v440, %v436
        %v442 = vmul.f32 1.0, %v441
        %v443 = vmul.f32 %v352, %v412
        %v444 = vmul.f32 %v353, %v427
        %v445 = vmul.f32 %v354, %v442
        %v446 = vld [vmem:[%s5] sm:$0x1]
        %v447 = vld [vmem:[#allocation2] sm:$0x1]
        %449 = vset.pattern.permute.xlu0 0
        %450 = vperm.xlu0 %449, %v447
        %v451 = vpop.permute.xlu0 %450
        %v453 = vperm.slane %v451, 0
        %v455 = vsel %vm316, %v446, 0
        %v458 = vsel %vm316, %v443, 0
        %v461 = vsel %vm316, %v444, 0
        %v464 = vsel %vm316, %v445, 0
        %466 = vmatpush.xpose.msra.mxu0 0.0
        %467 = vmatpush.xpose.msra.mxu0 0.0
        %468 = vmatpush.xpose.msra.mxu0 0.0
        %469 = vmatpush.xpose.msra.mxu0 0.0
        %470 = vmatpush.xpose.msra.mxu0 0.0
        %471 = vmatpush.xpose.msra.mxu0 0.0
        %472 = vmatpush.xpose.msra.mxu0 0.0
        %473 = vmatpush.xpose.msra.mxu0 0.0
        %474 = vmatpush.xpose.msra.mxu0 0.0
        %475 = vmatpush.xpose.msra.mxu0 0.0
        %476 = vmatpush.xpose.msra.mxu0 0.0
        %477 = vmatpush.xpose.msra.mxu0 0.0
        %478 = vmatpush.xpose.msra.mxu0 0.0
        %479 = vmatpush.xpose.msra.mxu0 %v464
        %480 = vmatpush.xpose.msra.mxu0 %v461
        %481 = vmatpush.xpose.msra.mxu0 %v458
        %482 = vmatmul.f32.gmra.mxu0 %v455
        %v483 = vpop.f32.mrf.mxu0
        %v484 = vadd.f32 %v453, %v483
        %485 = vdwg.mxu0
        %vm486 = vcmask 155648
        %487 = vst.msk [vmem:[%s297] sm:$0x1] %vm486, %v484
        %s488 = sand.u32 %s199, 1
        %s489 = scalar_lea.sflag [#allocation4], %s488
        %s490 = sand.u32 %s199, 1
        %s491 = scalar_lea.vmem [#allocation3], %s490
        // Predicated region
        $region49: #{tpu_custom_call.1} parent=47 // pred_check
          %p492 = pneg %p209
        $region50: #{tpu_custom_call.1} parent=47 // pred_check_branch
          %494 = sbr.rel (%p492) target = $region52
        $region51: #{tpu_custom_call.1} parent=47 // pred_region
          %496 = vsyncadd %s489, 0
          %s497 = sadd.s32 %s28, %s27
          %s498 = scalar_lea.hbm %s7, %s497
          %s500 = sshll.u32 %s491, 4
          %s501 = int_to_ptr.vmem [resolvable:$true] %s500
          %s502 = sshll.u32 %s498, 4
          %s503 = int_to_ptr.hbm [resolvable:$true] %s502
          %505 = dma.vmem_to_hbm [thread:$0]  %s501, 16, %s503, %s489
        $region52: #{tpu_custom_call.1} parent=47 // pred_fallthru
          _
      $region48: #{tpu_custom_call.1} parent=5 // pred_fallthru
        _
      %p506 = scmp.le.s32.totalorder 2, %s18
      // Predicated region
      $region53: #{tpu_custom_call.1} parent=5 // pred_check
        %p507 = pneg %p506
      $region54: #{tpu_custom_call.1} parent=5 // pred_check_branch
        %509 = sbr.rel (%p507) target = $region56
      $region55: #{tpu_custom_call.1} parent=5 // pred_region
        %s510 = ssub.s32 %s18, 2
        // Predicated region
        $region57: #{tpu_custom_call.1} parent=55 // pred_check
          %p511 = pneg %p215
        $region58: #{tpu_custom_call.1} parent=55 // pred_check_branch
          %513 = sbr.rel (%p511) target = $region60
        $region59: #{tpu_custom_call.1} parent=55 // pred_region
          %s514 = sand.u32 %s200, 1
          %s515 = scalar_lea.sflag [#allocation4], %s514
          %s516 = sand.u32 %s200, 1
          %s517 = scalar_lea.vmem [#allocation3], %s516
          %519 = dma.done %s515, 16
        $region60: #{tpu_custom_call.1} parent=55 // pred_fallthru
          _
      $region56: #{tpu_custom_call.1} parent=5 // pred_fallthru
        _
    $region6: #{tpu_custom_call.1} parent=1 // loop_footer
      %s22 = sadd.s32 1, %s18
    $region7: #{tpu_custom_call.1} parent=1 // loop_footer_branch
      %17 = sbr.rel target = $region3
    $region8: #{tpu_custom_call.1} parent=1 // loop_exit
      _
    %520 = vsyncpa [#allocation4], 1
    %s521 = scalar_lea.sflag [#allocation4], 1
    %522 = vsyncpa %s521, 1

</llo_original>
